<compile_context>
chip_gen: v5e
topology: v5e:2x2
jax: 0.10.0
libtpu: 0.0.40
codegen_flags: <defaults>
</compile_context>

<pallas_src>
import functools

import numpy as np

import jax
import jax.numpy as jnp
from jax import lax
from jax.experimental import pallas as pl
from jax.experimental.pallas import tpu as pltpu

KSIZE = 3
PAD = 1
EPS = 1e-5


# ----------------------------------------------------------------------------
# Kernel 1: (optional fused BN+ReLU on the input) -> 3x3 conv (+bias) for the
# WHOLE batch in one step, plus f32 partial sums for the BatchNorm statistics.
# ----------------------------------------------------------------------------
def conv_band_kernel(x_ref, mats_ref, bias_ref, scale_ref, shift_ref,
                     y_ref, rs_ref, rsq_ref, xpad_ref, *, apply_input_act):
    # x_ref:     (N, H, W*Cin)          flat NHWC activations (f32 or bf16)
    # mats_ref:  (3, W*Cin, W*Cout)     banded weight matrices, column halo folded (bf16)
    # bias_ref:  (1, W*Cout)            conv bias tiled over w (f32)
    # scale_ref: (1, W*Cin)             BN scale of the INPUT, tiled over w (f32)
    # shift_ref: (1, W*Cin)             BN shift of the INPUT, tiled over w (f32)
    # y_ref:     (N, H, W*Cout)         conv output (pre-BN), lane-dense (bf16)
    # rs_ref:    (1, W*Cout)            sum over (n, h) of y
    # rsq_ref:   (1, W*Cout)            sum over (n, h) of y*y
    # xpad_ref:  VMEM (N*(H+2), W*Cin)  bf16 stacked images with 1-row zero halos
    N, H, wc_in = x_ref.shape
    wc_out = y_ref.shape[2]
    stride = H + 2 * PAD
    m_out = N * stride - 2 * PAD

    xin = x_ref[...].astype(jnp.float32)                         # (N, H, W*Cin)
    if apply_input_act:  # fused BatchNorm + ReLU of the previous stage (static flag)
        xin = jnp.maximum(xin * scale_ref[...] + shift_ref[...], 0.0)
    xin = xin.astype(jnp.bfloat16)                               # single cast for the MXU

    # Zero ONLY the halo rows (interior rows are fully overwritten below).
    zero_row = jnp.zeros((1, wc_in), jnp.bfloat16)
    for n in range(N):
        base = n * stride
        xpad_ref[base:base + 1, :] = zero_row                    # top halo
        xpad_ref[base + 1:base + 1 + H, :] = xin[n]              # lane-aligned interior
        xpad_ref[base + H + 1:base + H + 2, :] = zero_row        # bottom halo

    # 3 banded matmuls (one per kernel row) over the whole stacked batch:
    # bf16 operands, f32 accumulation.  Valid output rows for image n are
    # acc[n*stride : n*stride + H]; the 2 rows straddling images are never read.
    acc = jnp.zeros((m_out, wc_out), jnp.float32)
    for di in range(KSIZE):
        acc = acc + jnp.dot(xpad_ref[di:di + m_out, :], mats_ref[di],
                            preferred_element_type=jnp.float32)
    acc = acc + bias_ref[...]                                    # broadcast (1, W*Cout)

    rs = jnp.zeros((1, wc_out), jnp.float32)
    rsq = jnp.zeros((1, wc_out), jnp.float32)
    for n in range(N):
        blk = acc[n * stride:n * stride + H, :]                  # (H, W*Cout), f32
        y_ref[n] = blk.astype(y_ref.dtype)                       # unmasked lane-dense store
        rs = rs + jnp.sum(blk, axis=0, keepdims=True)            # stats in f32, pre-cast
        rsq = rsq + jnp.sum(blk * blk, axis=0, keepdims=True)
    rs_ref[...] = rs
    rsq_ref[...] = rsq


def conv3x3_band(x_flat, mats, bias_flat, scale_flat, shift_flat, *,
                 apply_input_act, out_dtype=jnp.bfloat16):
    N, H, wc_in = x_flat.shape
    ks, kdim, wc_out = mats.shape
    assert kdim == wc_in, (kdim, wc_in)
    kernel = functools.partial(conv_band_kernel, apply_input_act=apply_input_act)
    y, rs, rsq = pl.pallas_call(
        kernel,
        grid=(1,),   # whole batch in one step (N folded into the matmul M dimension)
        in_specs=[
            pl.BlockSpec((N, H, wc_in), lambda i: (0, 0, 0)),
            pl.BlockSpec((ks, kdim, wc_out), lambda i: (0, 0, 0)),
            pl.BlockSpec((1, wc_out), lambda i: (0, 0)),
            pl.BlockSpec((1, wc_in), lambda i: (0, 0)),
            pl.BlockSpec((1, wc_in), lambda i: (0, 0)),
        ],
        out_specs=[
            pl.BlockSpec((N, H, wc_out), lambda i: (0, 0, 0)),
            pl.BlockSpec((1, wc_out), lambda i: (0, 0)),
            pl.BlockSpec((1, wc_out), lambda i: (0, 0)),
        ],
        out_shape=[
            jax.ShapeDtypeStruct((N, H, wc_out), out_dtype),     # bf16 intermediate in HBM
            jax.ShapeDtypeStruct((1, wc_out), jnp.float32),
            jax.ShapeDtypeStruct((1, wc_out), jnp.float32),
        ],
        scratch_shapes=[pltpu.VMEM((N * (H + 2 * PAD), wc_in), jnp.bfloat16)],
        compiler_params=pltpu.CompilerParams(dimension_semantics=("arbitrary",)),
    )(x_flat, mats, bias_flat, scale_flat, shift_flat)
    return y, rs, rsq


# ----------------------------------------------------------------------------
# Kernel 2: final fused BatchNorm (per-channel scale/shift) + ReLU, lane-dense.
# ----------------------------------------------------------------------------
def bn_relu_kernel(y_ref, scale_ref, shift_ref, o_ref):
    z = y_ref[...].astype(jnp.float32) * scale_ref[...] + shift_ref[...]
    o_ref[...] = jnp.maximum(z, 0.0).astype(o_ref.dtype)


def bn_relu(y_flat, scale_flat, shift_flat):
    N, H, wc = y_flat.shape
    return pl.pallas_call(
        bn_relu_kernel,
        grid=(1,),
        in_specs=[
            pl.BlockSpec((N, H, wc), lambda i: (0, 0, 0)),
            pl.BlockSpec((1, wc), lambda i: (0, 0)),
            pl.BlockSpec((1, wc), lambda i: (0, 0)),
        ],
        out_specs=pl.BlockSpec((N, H, wc), lambda i: (0, 0, 0)),
        out_shape=jax.ShapeDtypeStruct((N, H, wc), jnp.float32),
        compiler_params=pltpu.CompilerParams(dimension_semantics=("arbitrary",)),
    )(y_flat, scale_flat, shift_flat)


# ----------------------------------------------------------------------------
# BatchNorm scale/shift from the f32 partial statistics (tiny wrapper math).
# TODO(synk): E[x^2]-E[x]^2 with f32 sums can cancel at much larger N*H*W; switch to
# a two-pass / shifted accumulation when scaling up (clamp hides it here).
# ----------------------------------------------------------------------------
def bn_scale_shift(rs, rsq, gamma, beta, count, W):
    C = gamma.shape[0]
    s = rs.reshape(W, C).sum(axis=0)                             # fold w -> per channel
    sq = rsq.reshape(W, C).sum(axis=0)
    mean = s / count
    var = jnp.maximum(sq / count - mean * mean, 0.0)
    inv_std = lax.rsqrt(var + EPS)
    scale = gamma * inv_std
    shift = beta - mean * scale
    # Tile per-channel vectors to the flat (w, c) layout: index w*C + c -> channel c.
    return jnp.tile(scale, W)[None, :], jnp.tile(shift, W)[None, :]


# ----------------------------------------------------------------------------
# ConvBlock forward (Pallas path)
# ----------------------------------------------------------------------------
def conv_block_forward(x_nchw, params):
    N, c_in, H, W = x_nchw.shape
    c_out = params["b1"].shape[0]

    # NCHW -> lane-dense flat NHWC (N, H, W*C).  Kept in XLA because the module
    # contract is NCHW; keep lane-dense end-to-end if the consumer allows.
    x_flat = jnp.transpose(x_nchw, (0, 2, 3, 1)).reshape(N, H, W * c_in)
    count = N * H * W

    dummy = jnp.zeros((1, W * c_in), jnp.float32)                # unused (apply_input_act=False)
    y1, rs1, rsq1 = conv3x3_band(x_flat, params["mats1"], params["b1_flat"],
                                 dummy, dummy, apply_input_act=False)
    scale1, shift1 = bn_scale_shift(rs1, rsq1, params["g1"], params["be1"], count, W)

    # Stage-1 BN + ReLU is fused into the second conv's input path.
    y2, rs2, rsq2 = conv3x3_band(y1, params["mats2"], params["b2_flat"],
                                 scale1, shift1, apply_input_act=True)
    scale2, shift2 = bn_scale_shift(rs2, rsq2, params["g2"], params["be2"], count, W)

    out_flat = bn_relu(y2, scale2, shift2)
    return jnp.transpose(out_flat.reshape(N, H, W, c_out), (0, 3, 1, 2))


# ----------------------------------------------------------------------------
# Weight preprocessing: banded matrices for the flat-layout conv-as-matmul with
# the column halo folded in (K = W*Cin exactly):
#   M_di[u*Cin + c, col*Cout + o] = w[di, dj, c, o]   with u = col + dj - 1, 0 <= u < W
# (out-of-range u corresponds to zero padding -> the term is simply dropped).
# Built once on the host; independent of the activations.
# ----------------------------------------------------------------------------
def build_band_mats(w_oihw, W):
    w = np.asarray(jax.device_get(w_oihw))                       # (Cout, Cin, 3, 3)
    w_hwio = np.transpose(w, (2, 3, 1, 0))                       # (3, 3, Cin, Cout)
    k, _, c_in, c_out = w_hwio.shape
    mats = np.zeros((k, W * c_in, W * c_out), np.float32)
    for di in range(k):
        for dj in range(k):
            for col in range(W):
                u = col + dj - PAD
                if 0 <= u < W:
                    mats[di, u * c_in:(u + 1) * c_in,
                         col * c_out:(col + 1) * c_out] = w_hwio[di, dj]
    return jnp.asarray(mats, dtype=jnp.bfloat16)                 # bf16 MXU operand


# ----------------------------------------------------------------------------
# Pure-JAX reference (for correctness check only)
# ----------------------------------------------------------------------------
def ref_forward(x_nchw, params):
    def conv(x, w_oihw, b):
        y = lax.conv_general_dilated(
            x, w_oihw, (1, 1), ((PAD, PAD), (PAD, PAD)),
            dimension_numbers=("NCHW", "OIHW", "NCHW"))
        return y + b[None, :, None, None]

    def bnrelu(y, g, be):
        m = y.mean(axis=(0, 2, 3), keepdims=True)
        v = y.var(axis=(0, 2, 3), keepdims=True)
        z = (y - m) / jnp.sqrt(v + EPS) * g[None, :, None, None] + be[None, :, None, None]
        return jnp.maximum(z, 0.0)

    h = bnrelu(conv(x_nchw, params["w1_oihw"], params["b1"]), params["g1"], params["be1"])
    h = bnrelu(conv(h, params["w2_oihw"], params["b2"]), params["g2"], params["be2"])
    return h


# ----------------------------------------------------------------------------
# Deterministic parameter init (shapes from ConvBlock.__init__)
# ----------------------------------------------------------------------------
def init_params(key, in_channels, out_channels, W):
    k1, k2, k3, k4 = jax.random.split(key, 4)
    w1_oihw = 0.1 * jax.random.normal(k1, (out_channels, in_channels, KSIZE, KSIZE), jnp.float32)
    b1 = 0.1 * jax.random.normal(k2, (out_channels,), jnp.float32)
    w2_oihw = 0.1 * jax.random.normal(k3, (out_channels, out_channels, KSIZE, KSIZE), jnp.float32)
    b2 = 0.1 * jax.random.normal(k4, (out_channels,), jnp.float32)
    # TODO(synk): BatchNorm running_mean/running_var buffer updates (module in-place
    # state) are not modeled; only the forward (training-mode) normalization is.
    return {
        "w1_oihw": w1_oihw, "b1": b1,
        "g1": jnp.ones((out_channels,), jnp.float32),     # BatchNorm2d default affine init
        "be1": jnp.zeros((out_channels,), jnp.float32),
        "w2_oihw": w2_oihw, "b2": b2,
        "g2": jnp.ones((out_channels,), jnp.float32),
        "be2": jnp.zeros((out_channels,), jnp.float32),
        # wrapper-side weight preprocessing (halo-free banded matrices)
        "mats1": build_band_mats(w1_oihw, W),
        "mats2": build_band_mats(w2_oihw, W),
        "b1_flat": jnp.tile(b1, W)[None, :],
        "b2_flat": jnp.tile(b2, W)[None, :],
    }


if __name__ == "__main__":
    key = jax.random.PRNGKey(0)
    kx, kp = jax.random.split(key)

    N, C_IN, C_OUT, H, W = 2, 4, 8, 16, 16
    x = jax.random.normal(kx, (N, C_IN, H, W), jnp.float32)
    params = init_params(kp, C_IN, C_OUT, W)

    out = jax.block_until_ready(conv_block_forward(x, params))
    ref = jax.block_until_ready(ref_forward(x, params))

    assert out.shape == (N, C_OUT, H, W), out.shape
    err = float(jnp.max(jnp.abs(out - ref)))
    assert err < 5e-2, f"max abs error too large: {err}"   # bf16 MXU operands / bf16 intermediates vs f32 reference
    print("KERNEL_OK")
</pallas_src>

<mosaic_0001>
module attributes {stable_mosaic.version = 11 : i64} {
  func.func @conv_band_kernel(%arg0: i32, %arg1: memref<2x16x64xf32, #tpu.memory_space<vmem>>, %arg2: memref<3x64x128xbf16, #tpu.memory_space<vmem>>, %arg3: memref<1x128xf32, #tpu.memory_space<vmem>>, %arg4: memref<1x64xf32, #tpu.memory_space<vmem>>, %arg5: memref<1x64xf32, #tpu.memory_space<vmem>>, %arg6: memref<2x16x128xbf16, #tpu.memory_space<vmem>>, %arg7: memref<1x128xf32, #tpu.memory_space<vmem>>, %arg8: memref<1x128xf32, #tpu.memory_space<vmem>>, %arg9: memref<36x64xbf16, #tpu.memory_space<vmem>>) attributes {dimension_semantics = [#tpu.dimension_semantics<arbitrary>], iteration_bounds = array<i64: 1>, scalar_prefetch = 0 : i64, scratch_operands = 1 : i64, tpu.core_type = #tpu.core_type<tc>, window_params = [{pipeline_mode = #tpu.pipeline_mode<synchronous>, transform_indices = @transform_0, window_bounds = array<i64: 2, 16, 64>}, {pipeline_mode = #tpu.pipeline_mode<synchronous>, transform_indices = @transform_1, window_bounds = array<i64: 3, 64, 128>}, {pipeline_mode = #tpu.pipeline_mode<synchronous>, transform_indices = @transform_2, window_bounds = array<i64: 1, 128>}, {pipeline_mode = #tpu.pipeline_mode<synchronous>, transform_indices = @transform_3, window_bounds = array<i64: 1, 64>}, {pipeline_mode = #tpu.pipeline_mode<synchronous>, transform_indices = @transform_4, window_bounds = array<i64: 1, 64>}, {pipeline_mode = #tpu.pipeline_mode<synchronous>, transform_indices = @transform_5, window_bounds = array<i64: 2, 16, 128>}, {pipeline_mode = #tpu.pipeline_mode<synchronous>, transform_indices = @transform_6, window_bounds = array<i64: 1, 128>}, {pipeline_mode = #tpu.pipeline_mode<synchronous>, transform_indices = @transform_7, window_bounds = array<i64: 1, 128>}]} {
    %c0 = arith.constant 0 : index
    %c0_0 = arith.constant 0 : index
    %c0_1 = arith.constant 0 : index
    %0 = vector.load %arg1[%c0, %c0_0, %c0_1] : memref<2x16x64xf32, #tpu.memory_space<vmem>>, vector<2x16x64xf32>
    %1 = arith.truncf %0 : vector<2x16x64xf32> to vector<2x16x64xbf16>
    %cst = arith.constant 0.000000e+00 : bf16
    %2 = vector.broadcast %cst : bf16 to vector<1x64xbf16>
    %c0_2 = arith.constant 0 : index
    %c0_3 = arith.constant 0 : index
    %3 = vector.load %arg9[%c0_2, %c0_3] : memref<36x64xbf16, #tpu.memory_space<vmem>>, vector<1x64xbf16>
    tpu.vector_store %arg9[%c0_2, %c0_3], %2 {strides = array<i32>} : memref<36x64xbf16, #tpu.memory_space<vmem>>, vector<1x64xbf16>,
    %4 = vector.extract_strided_slice %1 {offsets = [0, 0, 0], sizes = [1, 16, 64], strides = [1, 1, 1]} : vector<2x16x64xbf16> to vector<1x16x64xbf16>
    %5 = vector.shape_cast %4 : vector<1x16x64xbf16> to vector<16x64xbf16>
    %c1 = arith.constant 1 : index
    %c0_4 = arith.constant 0 : index
    %6 = vector.load %arg9[%c1, %c0_4] : memref<36x64xbf16, #tpu.memory_space<vmem>>, vector<16x64xbf16>
    tpu.vector_store %arg9[%c1, %c0_4], %5 {strides = array<i32>} : memref<36x64xbf16, #tpu.memory_space<vmem>>, vector<16x64xbf16>,
    %c17 = arith.constant 17 : index
    %c0_5 = arith.constant 0 : index
    %7 = vector.load %arg9[%c17, %c0_5] : memref<36x64xbf16, #tpu.memory_space<vmem>>, vector<1x64xbf16>
    tpu.vector_store %arg9[%c17, %c0_5], %2 {strides = array<i32>} : memref<36x64xbf16, #tpu.memory_space<vmem>>, vector<1x64xbf16>,
    %c18 = arith.constant 18 : index
    %c0_6 = arith.constant 0 : index
    %8 = vector.load %arg9[%c18, %c0_6] : memref<36x64xbf16, #tpu.memory_space<vmem>>, vector<1x64xbf16>
    tpu.vector_store %arg9[%c18, %c0_6], %2 {strides = array<i32>} : memref<36x64xbf16, #tpu.memory_space<vmem>>, vector<1x64xbf16>,
    %9 = vector.extract_strided_slice %1 {offsets = [1, 0, 0], sizes = [1, 16, 64], strides = [1, 1, 1]} : vector<2x16x64xbf16> to vector<1x16x64xbf16>
    %10 = vector.shape_cast %9 : vector<1x16x64xbf16> to vector<16x64xbf16>
    %c19 = arith.constant 19 : index
    %c0_7 = arith.constant 0 : index
    %11 = vector.load %arg9[%c19, %c0_7] : memref<36x64xbf16, #tpu.memory_space<vmem>>, vector<16x64xbf16>
    tpu.vector_store %arg9[%c19, %c0_7], %10 {strides = array<i32>} : memref<36x64xbf16, #tpu.memory_space<vmem>>, vector<16x64xbf16>,
    %c35 = arith.constant 35 : index
    %c0_8 = arith.constant 0 : index
    %12 = vector.load %arg9[%c35, %c0_8] : memref<36x64xbf16, #tpu.memory_space<vmem>>, vector<1x64xbf16>
    tpu.vector_store %arg9[%c35, %c0_8], %2 {strides = array<i32>} : memref<36x64xbf16, #tpu.memory_space<vmem>>, vector<1x64xbf16>,
    %cst_9 = arith.constant 0.000000e+00 : f32
    %13 = vector.broadcast %cst_9 : f32 to vector<34x128xf32>
    %c0_10 = arith.constant 0 : index
    %c0_11 = arith.constant 0 : index
    %14 = vector.load %arg9[%c0_10, %c0_11] : memref<36x64xbf16, #tpu.memory_space<vmem>>, vector<34x64xbf16>
    %c0_12 = arith.constant 0 : index
    %c0_13 = arith.constant 0 : index
    %c0_14 = arith.constant 0 : index
    %15 = vector.load %arg2[%c0_12, %c0_13, %c0_14] : memref<3x64x128xbf16, #tpu.memory_space<vmem>>, vector<1x64x128xbf16>
    %16 = vector.shape_cast %15 : vector<1x64x128xbf16> to vector<64x128xbf16>
    %cst_15 = arith.constant dense<0.000000e+00> : vector<34x128xf32>
    %17 = tpu.matmul %14, %16, %cst_15 {dimension_numbers = #tpu.dot_dimension_numbers<[1], [0], [0], [1], [0, 0, 1, 1], [], []>} : vector<34x64xbf16>, vector<64x128xbf16>, vector<34x128xf32> -> vector<34x128xf32>
    %18 = arith.addf %13, %17 : vector<34x128xf32>
    %c1_16 = arith.constant 1 : index
    %c0_17 = arith.constant 0 : index
    %19 = vector.load %arg9[%c1_16, %c0_17] : memref<36x64xbf16, #tpu.memory_space<vmem>>, vector<34x64xbf16>
    %c1_18 = arith.constant 1 : index
    %c0_19 = arith.constant 0 : index
    %c0_20 = arith.constant 0 : index
    %20 = vector.load %arg2[%c1_18, %c0_19, %c0_20] : memref<3x64x128xbf16, #tpu.memory_space<vmem>>, vector<1x64x128xbf16>
    %21 = vector.shape_cast %20 : vector<1x64x128xbf16> to vector<64x128xbf16>
    %cst_21 = arith.constant dense<0.000000e+00> : vector<34x128xf32>
    %22 = tpu.matmul %19, %21, %cst_21 {dimension_numbers = #tpu.dot_dimension_numbers<[1], [0], [0], [1], [0, 0, 1, 1], [], []>} : vector<34x64xbf16>, vector<64x128xbf16>, vector<34x128xf32> -> vector<34x128xf32>
    %23 = arith.addf %18, %22 : vector<34x128xf32>
    %c2 = arith.constant 2 : index
    %c0_22 = arith.constant 0 : index
    %24 = vector.load %arg9[%c2, %c0_22] : memref<36x64xbf16, #tpu.memory_space<vmem>>, vector<34x64xbf16>
    %c2_23 = arith.constant 2 : index
    %c0_24 = arith.constant 0 : index
    %c0_25 = arith.constant 0 : index
    %25 = vector.load %arg2[%c2_23, %c0_24, %c0_25] : memref<3x64x128xbf16, #tpu.memory_space<vmem>>, vector<1x64x128xbf16>
    %26 = vector.shape_cast %25 : vector<1x64x128xbf16> to vector<64x128xbf16>
    %cst_26 = arith.constant dense<0.000000e+00> : vector<34x128xf32>
    %27 = tpu.matmul %24, %26, %cst_26 {dimension_numbers = #tpu.dot_dimension_numbers<[1], [0], [0], [1], [0, 0, 1, 1], [], []>} : vector<34x64xbf16>, vector<64x128xbf16>, vector<34x128xf32> -> vector<34x128xf32>
    %28 = arith.addf %23, %27 : vector<34x128xf32>
    %c0_27 = arith.constant 0 : index
    %c0_28 = arith.constant 0 : index
    %29 = vector.load %arg3[%c0_27, %c0_28] : memref<1x128xf32, #tpu.memory_space<vmem>>, vector<1x128xf32>
    %30 = vector.broadcast %29 : vector<1x128xf32> to vector<34x128xf32>
    %31 = arith.addf %28, %30 : vector<34x128xf32>
    %cst_29 = arith.constant 0.000000e+00 : f32
    %32 = vector.broadcast %cst_29 : f32 to vector<1x128xf32>
    %cst_30 = arith.constant 0.000000e+00 : f32
    %33 = vector.broadcast %cst_30 : f32 to vector<1x128xf32>
    %34 = vector.extract_strided_slice %31 {offsets = [0, 0], sizes = [16, 128], strides = [1, 1]} : vector<34x128xf32> to vector<16x128xf32>
    %35 = arith.truncf %34 : vector<16x128xf32> to vector<16x128xbf16>
    %c0_31 = arith.constant 0 : index
    %c0_32 = arith.constant 0 : index
    %c0_33 = arith.constant 0 : index
    %36 = vector.load %arg6[%c0_31, %c0_32, %c0_33] : memref<2x16x128xbf16, #tpu.memory_space<vmem>>, vector<1x16x128xbf16>
    %37 = vector.shape_cast %36 : vector<1x16x128xbf16> to vector<16x128xbf16>
    %38 = vector.shape_cast %35 : vector<16x128xbf16> to vector<1x16x128xbf16>
    tpu.vector_store %arg6[%c0_31, %c0_32, %c0_33], %38 {strides = array<i32>} : memref<2x16x128xbf16, #tpu.memory_space<vmem>>, vector<1x16x128xbf16>,
    %cst_34 = arith.constant dense<0.000000e+00> : vector<128xf32>
    %39 = vector.multi_reduction <add>, %34, %cst_34 [0] : vector<16x128xf32> to vector<128xf32>
    %40 = vector.shape_cast %39 : vector<128xf32> to vector<1x128xf32>
    %41 = arith.addf %32, %40 : vector<1x128xf32>
    %42 = arith.mulf %34, %34 : vector<16x128xf32>
    %cst_35 = arith.constant dense<0.000000e+00> : vector<128xf32>
    %43 = vector.multi_reduction <add>, %42, %cst_35 [0] : vector<16x128xf32> to vector<128xf32>
    %44 = vector.shape_cast %43 : vector<128xf32> to vector<1x128xf32>
    %45 = arith.addf %33, %44 : vector<1x128xf32>
    %46 = vector.extract_strided_slice %31 {offsets = [18, 0], sizes = [16, 128], strides = [1, 1]} : vector<34x128xf32> to vector<16x128xf32>
    %47 = arith.truncf %46 : vector<16x128xf32> to vector<16x128xbf16>
    %c1_36 = arith.constant 1 : index
    %c0_37 = arith.constant 0 : index
    %c0_38 = arith.constant 0 : index
    %48 = vector.load %arg6[%c1_36, %c0_37, %c0_38] : memref<2x16x128xbf16, #tpu.memory_space<vmem>>, vector<1x16x128xbf16>
    %49 = vector.shape_cast %48 : vector<1x16x128xbf16> to vector<16x128xbf16>
    %50 = vector.shape_cast %47 : vector<16x128xbf16> to vector<1x16x128xbf16>
    tpu.vector_store %arg6[%c1_36, %c0_37, %c0_38], %50 {strides = array<i32>} : memref<2x16x128xbf16, #tpu.memory_space<vmem>>, vector<1x16x128xbf16>,
    %cst_39 = arith.constant dense<0.000000e+00> : vector<128xf32>
    %51 = vector.multi_reduction <add>, %46, %cst_39 [0] : vector<16x128xf32> to vector<128xf32>
    %52 = vector.shape_cast %51 : vector<128xf32> to vector<1x128xf32>
    %53 = arith.addf %41, %52 : vector<1x128xf32>
    %54 = arith.mulf %46, %46 : vector<16x128xf32>
    %cst_40 = arith.constant dense<0.000000e+00> : vector<128xf32>
    %55 = vector.multi_reduction <add>, %54, %cst_40 [0] : vector<16x128xf32> to vector<128xf32>
    %56 = vector.shape_cast %55 : vector<128xf32> to vector<1x128xf32>
    %57 = arith.addf %45, %56 : vector<1x128xf32>
    %c0_41 = arith.constant 0 : index
    %c0_42 = arith.constant 0 : index
    %58 = vector.load %arg7[%c0_41, %c0_42] : memref<1x128xf32, #tpu.memory_space<vmem>>, vector<1x128xf32>
    tpu.vector_store %arg7[%c0_41, %c0_42], %53 {strides = array<i32>} : memref<1x128xf32, #tpu.memory_space<vmem>>, vector<1x128xf32>,
    %c0_43 = arith.constant 0 : index
    %c0_44 = arith.constant 0 : index
    %59 = vector.load %arg8[%c0_43, %c0_44] : memref<1x128xf32, #tpu.memory_space<vmem>>, vector<1x128xf32>
    tpu.vector_store %arg8[%c0_43, %c0_44], %57 {strides = array<i32>} : memref<1x128xf32, #tpu.memory_space<vmem>>, vector<1x128xf32>,
    return
  }
  func.func @transform_0(%arg0: i32) -> (i32, i32, i32) {
    %c0_i32 = arith.constant 0 : i32
    %c0_i32_0 = arith.constant 0 : i32
    %c0_i32_1 = arith.constant 0 : i32
    %c0_i32_2 = arith.constant 0 : i32
    return %c0_i32, %c0_i32_0, %c0_i32_1 : i32, i32, i32
  }
  func.func @transform_1(%arg0: i32) -> (i32, i32, i32) {
    %c0_i32 = arith.constant 0 : i32
    %c0_i32_0 = arith.constant 0 : i32
    %c0_i32_1 = arith.constant 0 : i32
    %c0_i32_2 = arith.constant 0 : i32
    return %c0_i32, %c0_i32_0, %c0_i32_1 : i32, i32, i32
  }
  func.func @transform_2(%arg0: i32) -> (i32, i32) {
    %c0_i32 = arith.constant 0 : i32
    %c0_i32_0 = arith.constant 0 : i32
    %c0_i32_1 = arith.constant 0 : i32
    return %c0_i32, %c0_i32_0 : i32, i32
  }
  func.func @transform_3(%arg0: i32) -> (i32, i32) {
    %c0_i32 = arith.constant 0 : i32
    %c0_i32_0 = arith.constant 0 : i32
    %c0_i32_1 = arith.constant 0 : i32
    return %c0_i32, %c0_i32_0 : i32, i32
  }
  func.func @transform_4(%arg0: i32) -> (i32, i32) {
    %c0_i32 = arith.constant 0 : i32
    %c0_i32_0 = arith.constant 0 : i32
    %c0_i32_1 = arith.constant 0 : i32
    return %c0_i32, %c0_i32_0 : i32, i32
  }
  func.func @transform_5(%arg0: i32) -> (i32, i32, i32) {
    %c0_i32 = arith.constant 0 : i32
    %c0_i32_0 = arith.constant 0 : i32
    %c0_i32_1 = arith.constant 0 : i32
    %c0_i32_2 = arith.constant 0 : i32
    return %c0_i32, %c0_i32_0, %c0_i32_1 : i32, i32, i32
  }
  func.func @transform_6(%arg0: i32) -> (i32, i32) {
    %c0_i32 = arith.constant 0 : i32
    %c0_i32_0 = arith.constant 0 : i32
    %c0_i32_1 = arith.constant 0 : i32
    return %c0_i32, %c0_i32_0 : i32, i32
  }
  func.func @transform_7(%arg0: i32) -> (i32, i32) {
    %c0_i32 = arith.constant 0 : i32
    %c0_i32_0 = arith.constant 0 : i32
    %c0_i32_1 = arith.constant 0 : i32
    return %c0_i32, %c0_i32_0 : i32, i32
  }
}

</mosaic_0001>

<llo_original>
// kernel: tpu_custom_call.1
$region0: #{tpu_custom_call.1}
  #allocation0 [shape = 'u32[]', space=smem, size = 0x4, offset = 0x4, fixed_abs, tag = 'smem constant byte address 0x4 - core index']
  #allocation1 [shape = 'u32[72,128]{1,0:T(1,128)}', space=vmem, size = 0x9000, scoped, tag = 'internal scratch']
  #allocation2 [shape = 'bf16[36,64]{1,0:T(8,128)(2,1)}', space=vmem, size = 0x2800, scoped, tag = 'scratch operand']
  %s0 = inlined_call_operand.hbm [shape: f32[2,16,64], index: 0, kind: input, shape index: {}]
  %s1 = inlined_call_operand.hbm [shape: bf16[3,64,128], index: 1, kind: input, shape index: {}]
  %s2 = inlined_call_operand.vmem [shape: f32[1,128], index: 2, kind: input, shape index: {}]
  %s3 = inlined_call_operand.vmem [shape: f32[1,64], index: 3, kind: input, shape index: {}]
  %s4 = inlined_call_operand.vmem [shape: f32[1,64], index: 4, kind: input, shape index: {}]
  %s5 = inlined_call_operand.hbm [shape: bf16[2,16,128], index: 5, kind: output, shape index: {0}]
  %s6 = inlined_call_operand.hbm [shape: f32[1,128], index: 6, kind: output, shape index: {1}]
  %s7 = inlined_call_operand.hbm [shape: f32[1,128], index: 7, kind: output, shape index: {2}]
  %8 = xla_tuple %s5, %s6, %s7
  %s9 = sld [smem:[#allocation0]]
  $region54: #{tpu_custom_call.1} parent=0
    _
  %s11 = ssub.s32 1, %s9
  %s12 = scalar_select 0, %s11, %s9
  $region1: #{tpu_custom_call.1} parent=0
    #allocation3 [shape = 'u8[16384]{0}', space=vmem, size = 0x4000, scoped, tag = 'input window, operand 0, single buffered']
    #allocation4 [shape = 's32[1]{0}', space=sflag, size = 0x4, scoped, tag = 'scoped memory for tpu_custom_call.1']
    #allocation5 [shape = 's32[1]{0}', space=sflag, size = 0x4, scoped, tag = 'scoped memory for tpu_custom_call.1']
    #allocation6 [shape = 'u8[49152]{0}', space=vmem, size = 0xc000, scoped, tag = 'input window, operand 1, single buffered']
    #allocation7 [shape = 's32[1]{0}', space=sflag, size = 0x4, scoped, tag = 'scoped memory for tpu_custom_call.1']
    #allocation8 [shape = 'u8[8192]{0}', space=vmem, size = 0x2000, scoped, tag = 'output window, operand 0, single buffered']
    #allocation9 [shape = 'u8[512]{0}', space=vmem, size = 0x400, scoped, tag = 'output window, operand 1, single buffered']
    #allocation10 [shape = 's32[1]{0}', space=sflag, size = 0x4, scoped, tag = 'scoped memory for tpu_custom_call.1']
    #allocation11 [shape = 'u8[512]{0}', space=vmem, size = 0x400, scoped, tag = 'output window, operand 2, single buffered']
    %13 = vsyncpa [#allocation4], 0
    %14 = vsyncpa [#allocation7], 0
    %15 = vsyncpa [#allocation5], 0
    %16 = vsyncpa [#allocation10], 0
    // Predicated region
    $region2: #{tpu_custom_call.1} parent=1 // pred_check
      _
    $region3: #{tpu_custom_call.1} parent=1 // pred_check_branch
      %18 = sbr.rel (0) target = $region5
    $region4: #{tpu_custom_call.1} parent=1 // pred_region
      %20 = vsyncadd [#allocation4], 0
      %s21 = sshll.u32 %s0, 4
      %s22 = int_to_ptr.hbm [resolvable:$true] %s21
      %s23 = sshll.u32 [#allocation3], 4
      %s24 = int_to_ptr.vmem [resolvable:$true] %s23
      %29 = dma.hbm_to_vmem [thread:$0]  %s22, 512, %s24, [#allocation4], 128, 128, 8
    $region5: #{tpu_custom_call.1} parent=1 // pred_fallthru
      _
    // Predicated region
    $region6: #{tpu_custom_call.1} parent=1 // pred_check
      _
    $region7: #{tpu_custom_call.1} parent=1 // pred_check_branch
      %31 = sbr.rel (0) target = $region9
    $region8: #{tpu_custom_call.1} parent=1 // pred_region
      %33 = vsyncadd [#allocation7], 0
      %s34 = sshll.u32 %s1, 4
      %s35 = int_to_ptr.hbm [resolvable:$true] %s34
      %s36 = sshll.u32 [#allocation6], 4
      %s37 = int_to_ptr.vmem [resolvable:$true] %s36
      %42 = dma.hbm_to_vmem [thread:$0]  %s35, 1536, %s37, [#allocation7], 64, 64, 4
    $region9: #{tpu_custom_call.1} parent=1 // pred_fallthru
      _
    // Predicated region
    $region10: #{tpu_custom_call.1} parent=1 // pred_check
      _
    $region11: #{tpu_custom_call.1} parent=1 // pred_check_branch
      %44 = sbr.rel (0) target = $region13
    $region12: #{tpu_custom_call.1} parent=1 // pred_region
      _
    $region13: #{tpu_custom_call.1} parent=1 // pred_fallthru
      _
    // Predicated region
    $region14: #{tpu_custom_call.1} parent=1 // pred_check
      _
    $region15: #{tpu_custom_call.1} parent=1 // pred_check_branch
      %46 = sbr.rel (0) target = $region17
    $region16: #{tpu_custom_call.1} parent=1 // pred_region
      _
    $region17: #{tpu_custom_call.1} parent=1 // pred_fallthru
      _
    // Predicated region
    $region18: #{tpu_custom_call.1} parent=1 // pred_check
      _
    $region19: #{tpu_custom_call.1} parent=1 // pred_check_branch
      %48 = sbr.rel (0) target = $region21
    $region20: #{tpu_custom_call.1} parent=1 // pred_region
      _
    $region21: #{tpu_custom_call.1} parent=1 // pred_fallthru
      _
    // Predicated region
    $region22: #{tpu_custom_call.1} parent=1 // pred_check
      _
    $region23: #{tpu_custom_call.1} parent=1 // pred_check_branch
      %50 = sbr.rel (0) target = $region25
    $region24: #{tpu_custom_call.1} parent=1 // pred_region
      %52 = dma.done [#allocation4], 512
    $region25: #{tpu_custom_call.1} parent=1 // pred_fallthru
      _
    // Predicated region
    $region26: #{tpu_custom_call.1} parent=1 // pred_check
      _
    $region27: #{tpu_custom_call.1} parent=1 // pred_check_branch
      %54 = sbr.rel (0) target = $region29
    $region28: #{tpu_custom_call.1} parent=1 // pred_region
      %56 = dma.done [#allocation7], 1536
    $region29: #{tpu_custom_call.1} parent=1 // pred_fallthru
      _
    %v58 = vld [vmem:[#allocation3] sm:$0xff]
    %v59 = vld [vmem:[#allocation3 + $0x8] sm:$0xff]
    %v60 = vld [vmem:[#allocation3 + $0x10] sm:$0xff]
    %v61 = vld [vmem:[#allocation3 + $0x18] sm:$0xff]
    %v62 = vpack.c.bf16 %v58, %v58
    %v63 = vpack.c.bf16 %v59, %v59
    %v64 = vpack.c.bf16 %v60, %v60
    %v65 = vpack.c.bf16 %v61, %v61
    %vm66 = vcmask 516096
    %vm67 = vsmask.f32 256
    %vm68 = vmand %vm66, %vm67
    %v69 = vld [vmem:[#allocation2] sm:$0x1]
    %v70 = vsel %vm68, 0, %v69
    %71 = vst [vmem:[#allocation2] sm:$0x1] %v70
    %vm72 = vsmask.f32 4368
    %vm73 = vmor %vm67, %vm72
    %v75 = vshrl.u32 %v62, 16
    %v77 = vrot.slane %v75, 7
    %v78 = vshll.u32 %v62, 16
    %v80 = vor.u32 %v77, %v78
    %v81 = vrot.slane %v77, 4
    %v83 = vshrl.u32 %v63, 16
    %v85 = vrot.slane %v83, 7
    %v86 = vshll.u32 %v63, 16
    %v88 = vor.u32 %v85, %v86
    %v89 = vsel %vm73, %v81, %v88
    %v90 = vrot.slane %v85, 4
    %vm94 = vcmask 519168
    %vm95 = vsmask.f32 7938
    %vm96 = vmand %vm94, %vm95
    %v97 = vld [vmem:[#allocation2] sm:$0xf]
    %v98 = vsel %vm96, %v80, %v97
    %99 = vst [vmem:[#allocation2] sm:$0xf] %v98
    %vm100 = vcmask 519168
    %101 = vst.msk [vmem:[#allocation2 + $0x4] sm:$0xf] %vm100, %v89
    %v102 = vld [vmem:[#allocation2 + $0x8] sm:$0x1]
    %v103 = vsel %vm68, %v90, %v102
    %104 = vst [vmem:[#allocation2 + $0x8] sm:$0x1] %v103
    %vm105 = vmand %vm66, %vm95
    %v106 = vld [vmem:[#allocation2 + $0x8] sm:$0x1]
    %v107 = vsel %vm105, 0, %v106
    %108 = vst [vmem:[#allocation2 + $0x8] sm:$0x1] %v107
    %vm109 = vcmask 517121
    %vm110 = vsmask.f32 1280
    %vm111 = vmand %vm109, %vm110
    %v112 = vld [vmem:[#allocation2 + $0x8] sm:$0x2]
    %v113 = vsel %vm111, 0, %v112
    %114 = vst [vmem:[#allocation2 + $0x8] sm:$0x2] %v113
    %vm115 = vsmask.f32 5392
    %vm116 = vmor %vm110, %vm115
    %v118 = vshrl.u32 %v64, 16
    %v120 = vrot.slane %v118, 6
    %v121 = vshll.u32 %v64, 16
    %v123 = vrot.slane %v121, 7
    %v124 = vor.u32 %v120, %v123
    %v125 = vrot.slane %v124, 4
    %v127 = vshrl.u32 %v65, 16
    %v129 = vrot.slane %v127, 6
    %v130 = vshll.u32 %v65, 16
    %v132 = vrot.slane %v130, 7
    %v133 = vor.u32 %v129, %v132
    %v134 = vsel %vm116, %v125, %v133
    %v135 = vrot.slane %v133, 4
    %vm139 = vcmask 519169
    %vm140 = vsmask.f32 7942
    %vm141 = vmand %vm139, %vm140
    %v142 = vld [vmem:[#allocation2 + $0x8] sm:$0xe]
    %v143 = vsel %vm141, %v124, %v142
    %144 = vst [vmem:[#allocation2 + $0x8] sm:$0xe] %v143
    %145 = vst.msk [vmem:[#allocation2 + $0xc] sm:$0xf] %vm100, %v134
    %vm146 = vcmask 517120
    %vm147 = vmand %vm146, %vm110
    %v148 = vld [vmem:[#allocation2 + $0x10] sm:$0x3]
    %v149 = vsel %vm147, %v135, %v148
    %150 = vst [vmem:[#allocation2 + $0x10] sm:$0x3] %v149
    %vm151 = vmand %vm109, %vm140
    %v152 = vld [vmem:[#allocation2 + $0x10] sm:$0x2]
    %v153 = vsel %vm151, 0, %v152
    %154 = vst [vmem:[#allocation2 + $0x10] sm:$0x2] %v153
    %v155 = vld [vmem:[#allocation2] sm:$0xf]
    %v156 = vld [vmem:[#allocation2 + $0x4] sm:$0xf]
    %v157 = vld [vmem:[#allocation2 + $0x8] sm:$0xf]
    %v158 = vld [vmem:[#allocation2 + $0xc] sm:$0xf]
    %v159 = vld [vmem:[#allocation2 + $0x10] sm:$0x1]
    %v160 = vld [vmem:[#allocation6] sm:$0xf]
    %v161 = vld [vmem:[#allocation6 + $0x4] sm:$0xf]
    %v162 = vld [vmem:[#allocation6 + $0x8] sm:$0xf]
    %v163 = vld [vmem:[#allocation6 + $0xc] sm:$0xf]
    %v164 = vld [vmem:[#allocation6 + $0x10] sm:$0xf]
    %v165 = vld [vmem:[#allocation6 + $0x14] sm:$0xf]
    %v166 = vld [vmem:[#allocation6 + $0x18] sm:$0xf]
    %v167 = vld [vmem:[#allocation6 + $0x1c] sm:$0xf]
    %v168 = vld [vmem:[#allocation2 + $0x10] sm:$0x3]
    %s169 = scalar_lea.vmem [#allocation6], 32
    %v170 = vld [vmem:[%s169] sm:$0xf]
    %v171 = vld [vmem:[%s169 + $0x4] sm:$0xf]
    %v172 = vld [vmem:[%s169 + $0x8] sm:$0xf]
    %v173 = vld [vmem:[%s169 + $0xc] sm:$0xf]
    %v174 = vld [vmem:[%s169 + $0x10] sm:$0xf]
    %v175 = vld [vmem:[%s169 + $0x14] sm:$0xf]
    %v176 = vld [vmem:[%s169 + $0x18] sm:$0xf]
    %v177 = vld [vmem:[%s169 + $0x1c] sm:$0xf]
    %v183 = vunpack.c.l.b16 %v155
    %v184 = vunpack.c.l.b16 %v156
    %v185 = vunpack.c.l.b16 %v157
    %v186 = vunpack.c.l.b16 %v158
    %v187 = vunpack.c.l.b16 %v168
    %v188 = vpack.c.b16 %v184, %v183
    %v189 = vpack.c.b16 %v186, %v185
    %v190 = vpack.c.b16 %v187, %v187
    %vm191 = vsmask.f32 7424
    %v193 = vshrl.u32 %v188, 16
    %v195 = vshll.u32 %v188, 16
    %v197 = vrot.slane %v195, 1
    %v198 = vor.u32 %v193, %v197
    %v200 = vshll.u32 %v189, 16
    %v202 = vrot.slane %v200, 1
    %v203 = vsel %vm191, %v198, %v202
    %v204 = vshrl.u32 %v189, 16
    %v206 = vor.u32 %v204, %v202
    %v208 = vshll.u32 %v190, 16
    %v210 = vrot.slane %v208, 1
    %v211 = vsel %vm191, %v206, %v210
    %v212 = vshrl.u32 %v190, 16
    %v214 = vor.u32 %v212, %v210
    %v223 = vunpack.c.l.b16 %v170
    %v224 = vunpack.c.l.b16 %v171
    %v225 = vunpack.c.l.b16 %v172
    %v226 = vunpack.c.l.b16 %v173
    %v227 = vunpack.c.l.b16 %v174
    %v228 = vunpack.c.l.b16 %v175
    %v229 = vunpack.c.l.b16 %v176
    %v230 = vunpack.c.l.b16 %v177
    %v231 = vpack.c.b16 %v224, %v223
    %v232 = vpack.c.b16 %v226, %v225
    %v233 = vpack.c.b16 %v228, %v227
    %v234 = vpack.c.b16 %v230, %v229
    %vm239 = vcmask 523264
    %v241 = vsel %vm239, %v203, 0
    %v244 = vsel %vm239, %v211, 0
    %v247 = vsel %vm239, %v214, 0
    %249 = vmatpush.bf16.msra.mxu0 0
    %250 = vmatpush.bf16.msra.mxu0 0
    %251 = vmatpush.bf16.msra.mxu0 0
    %252 = vmatpush.bf16.msra.mxu0 0
    %253 = vmatpush.bf16.msra.mxu0 %v234
    %254 = vmatpush.bf16.msra.mxu0 %v233
    %255 = vmatpush.bf16.msra.mxu0 %v232
    %256 = vmatpush.bf16.msra.mxu0 %v231
    %257 = vmatmul.bf16.gmra.mxu0 %v241
    %v258 = vpop.f32.mrf.mxu0
    %v259 = vadd.f32 0.0, %v258
    %v260 = vpop.f32.mrf.mxu0
    %v261 = vadd.f32 0.0, %v260
    %262 = vmatmul.bf16.gmra.mxu0 %v244
    %v263 = vpop.f32.mrf.mxu0
    %v264 = vadd.f32 0.0, %v263
    %v265 = vpop.f32.mrf.mxu0
    %v266 = vadd.f32 0.0, %v265
    %267 = vmatmul.bf16.gmra.mxu0 %v247
    %v268 = vpop.f32.mrf.mxu0
    %v269 = vadd.f32 0.0, %v268
    %v270 = vpop.f32.mrf.mxu0
    %271 = vdwg.mxu0
    %v273 = vunpack.c.l.b16 %v159
    %v274 = vpack.c.b16 %v273, %v273
    %v283 = vunpack.c.l.b16 %v160
    %v284 = vunpack.c.l.b16 %v161
    %v285 = vunpack.c.l.b16 %v162
    %v286 = vunpack.c.l.b16 %v163
    %v287 = vunpack.c.l.b16 %v164
    %v288 = vunpack.c.l.b16 %v165
    %v289 = vunpack.c.l.b16 %v166
    %v290 = vunpack.c.l.b16 %v167
    %v291 = vpack.c.b16 %v284, %v283
    %v292 = vpack.c.b16 %v286, %v285
    %v293 = vpack.c.b16 %v288, %v287
    %v294 = vpack.c.b16 %v290, %v289
    %v299 = vsel %vm239, %v188, 0
    %v301 = vsel %vm239, %v189, 0
    %v304 = vsel %vm239, %v274, 0
    %306 = vmatpush.bf16.msra.mxu0 0
    %307 = vmatpush.bf16.msra.mxu0 0
    %308 = vmatpush.bf16.msra.mxu0 0
    %309 = vmatpush.bf16.msra.mxu0 0
    %310 = vmatpush.bf16.msra.mxu0 %v294
    %311 = vmatpush.bf16.msra.mxu0 %v293
    %312 = vmatpush.bf16.msra.mxu0 %v292
    %313 = vmatpush.bf16.msra.mxu0 %v291
    %314 = vmatmul.bf16.gmra.mxu0 %v299
    %v315 = vpop.f32.mrf.mxu0
    %v316 = vadd.f32 %v259, %v315
    %v317 = vpop.f32.mrf.mxu0
    %v318 = vadd.f32 %v261, %v317
    %319 = vmatmul.bf16.gmra.mxu0 %v301
    %v320 = vpop.f32.mrf.mxu0
    %v321 = vadd.f32 %v264, %v320
    %v322 = vpop.f32.mrf.mxu0
    %v323 = vadd.f32 %v266, %v322
    %324 = vmatmul.bf16.gmra.mxu0 %v304
    %v325 = vpop.f32.mrf.mxu0
    %v326 = vadd.f32 %v269, %v325
    %v327 = vpop.f32.mrf.mxu0
    %328 = vdwg.mxu0
    %v329 = vld [vmem:[#allocation2] sm:$0xe]
    %s330 = scalar_lea.vmem [#allocation6], 64
    %v331 = vld [vmem:[%s330] sm:$0xf]
    %v332 = vld [vmem:[%s330 + $0x4] sm:$0xf]
    %v333 = vld [vmem:[%s330 + $0x8] sm:$0xf]
    %v334 = vld [vmem:[%s330 + $0xc] sm:$0xf]
    %v335 = vld [vmem:[%s330 + $0x10] sm:$0xf]
    %v336 = vld [vmem:[%s330 + $0x14] sm:$0xf]
    %v337 = vld [vmem:[%s330 + $0x18] sm:$0xf]
    %v338 = vld [vmem:[%s330 + $0x1c] sm:$0xf]
    %v340 = vunpack.c.l.b16 %v329
    %v341 = vpack.c.b16 %v184, %v340
    %vm342 = vcmask 1046528
    %v343 = vrot.slane %v341, 1
    %v344 = vrot.slane %v189, 1
    %v345 = vsel %vm342, %v343, %v344
    %v346 = vrot.slane %v190, 1
    %v347 = vsel %vm342, %v344, %v346
    %v356 = vunpack.c.l.b16 %v331
    %v357 = vunpack.c.l.b16 %v332
    %v358 = vunpack.c.l.b16 %v333
    %v359 = vunpack.c.l.b16 %v334
    %v360 = vunpack.c.l.b16 %v335
    %v361 = vunpack.c.l.b16 %v336
    %v362 = vunpack.c.l.b16 %v337
    %v363 = vunpack.c.l.b16 %v338
    %v364 = vpack.c.b16 %v357, %v356
    %v365 = vpack.c.b16 %v359, %v358
    %v366 = vpack.c.b16 %v361, %v360
    %v367 = vpack.c.b16 %v363, %v362
    %v373 = vsel %vm239, %v345, 0
    %v376 = vsel %vm239, %v347, 0
    %v379 = vsel %vm239, %v346, 0
    %381 = vmatpush.bf16.msra.mxu0 0
    %382 = vmatpush.bf16.msra.mxu0 0
    %383 = vmatpush.bf16.msra.mxu0 0
    %384 = vmatpush.bf16.msra.mxu0 0
    %385 = vmatpush.bf16.msra.mxu0 %v367
    %386 = vmatpush.bf16.msra.mxu0 %v366
    %387 = vmatpush.bf16.msra.mxu0 %v365
    %388 = vmatpush.bf16.msra.mxu0 %v364
    %389 = vmatmul.bf16.gmra.mxu0 %v373
    %v390 = vpop.f32.mrf.mxu0
    %v391 = vadd.f32 0.0, %v390
    %v392 = vpop.f32.mrf.mxu0
    %v393 = vadd.f32 0.0, %v392
    %394 = vmatmul.bf16.gmra.mxu0 %v376
    %v395 = vpop.f32.mrf.mxu0
    %v396 = vadd.f32 0.0, %v395
    %v397 = vpop.f32.mrf.mxu0
    %v398 = vadd.f32 0.0, %v397
    %399 = vmatmul.bf16.gmra.mxu0 %v379
    %v400 = vpop.f32.mrf.mxu0
    %v401 = vadd.f32 0.0, %v400
    %v402 = vpop.f32.mrf.mxu0
    %403 = vdwg.mxu0
    %v404 = vadd.f32 %v316, %v391
    %v405 = vadd.f32 %v318, %v393
    %v406 = vadd.f32 %v321, %v396
    %v407 = vadd.f32 %v323, %v398
    %v408 = vadd.f32 %v326, %v401
    %v409 = vld [vmem:[%s2] sm:$0x1]
    %v411 = vperm.slane %v409, 0
    %v413 = vadd.f32 %v404, %v411
    %v414 = vadd.f32 %v405, %v411
    %v415 = vadd.f32 %v406, %v411
    %v416 = vadd.f32 %v407, %v411
    %v417 = vadd.f32 %v408, %v411
    %v418 = vpack.c.bf16 %v413, %v413
    %v419 = vpack.c.bf16 %v414, %v414
    %420 = vst [vmem:[#allocation8] sm:$0xf] %v418
    %421 = vst [vmem:[#allocation8 + $0x4] sm:$0xf] %v419
    %v422 = vadd.f32 %v413, %v414
    %v423 = vrot.slane %v422, 4
    %v424 = vadd.f32 %v422, %v423
    %v425 = vrot.slane %v424, 2
    %v426 = vadd.f32 %v424, %v425
    %v427 = vrot.slane %v426, 1
    %v428 = vadd.f32 %v426, %v427
    %v429 = vadd.f32 %v428, 0.0
    %v430 = vmul.f32 %v413, %v413
    %v431 = vmul.f32 %v414, %v414
    %v432 = vadd.f32 %v430, %v431
    %v433 = vrot.slane %v432, 4
    %v434 = vadd.f32 %v432, %v433
    %v435 = vrot.slane %v434, 2
    %v436 = vadd.f32 %v434, %v435
    %v437 = vrot.slane %v436, 1
    %v438 = vadd.f32 %v436, %v437
    %v439 = vadd.f32 %v438, 0.0
    %v440 = vpack.c.bf16 %v415, %v415
    %v441 = vpack.c.bf16 %v416, %v416
    %v442 = vpack.c.bf16 %v417, %v417
    %vm446 = vcmask 1042432
    %vm447 = vcmask 1046532
    %vm448 = vmor %vm446, %vm447
    %v449 = vrot.slane %v440, 5
    %v450 = vrot.slane %v449, 4
    %v451 = vrot.slane %v441, 5
    %v452 = vsel %vm448, %v450, %v451
    %v453 = vrot.slane %v451, 4
    %v454 = vrot.slane %v442, 5
    %v455 = vsel %vm448, %v453, %v454
    %s458 = scalar_lea.vmem [#allocation8], 8
    %459 = vst [vmem:[%s458] sm:$0xf] %v452
    %460 = vst [vmem:[%s458 + $0x4] sm:$0xf] %v455
    %vm464 = vcmask 1045504
    %v465 = vrot.slane %v415, 2
    %v466 = vrot.slane %v416, 2
    %v467 = vsel %vm464, %v465, %v466
    %v468 = vrot.slane %v417, 2
    %v469 = vsel %vm464, %v466, %v468
    %v472 = vadd.f32 %v467, %v469
    %v473 = vrot.slane %v472, 4
    %v474 = vadd.f32 %v472, %v473
    %v475 = vrot.slane %v474, 2
    %v476 = vadd.f32 %v474, %v475
    %v477 = vrot.slane %v476, 1
    %v478 = vadd.f32 %v476, %v477
    %v479 = vadd.f32 %v429, %v478
    %v480 = vmul.f32 %v415, %v415
    %v481 = vmul.f32 %v416, %v416
    %v482 = vmul.f32 %v417, %v417
    %v486 = vrot.slane %v480, 2
    %v487 = vrot.slane %v481, 2
    %v488 = vsel %vm464, %v486, %v487
    %v489 = vrot.slane %v482, 2
    %v490 = vsel %vm464, %v487, %v489
    %v493 = vadd.f32 %v488, %v490
    %v494 = vrot.slane %v493, 4
    %v495 = vadd.f32 %v493, %v494
    %v496 = vrot.slane %v495, 2
    %v497 = vadd.f32 %v495, %v496
    %v498 = vrot.slane %v497, 1
    %v499 = vadd.f32 %v497, %v498
    %v500 = vadd.f32 %v439, %v499
    %501 = vst [vmem:[#allocation9] sm:$0x1] %v479
    %502 = vst [vmem:[#allocation11] sm:$0x1] %v500
    // Predicated region
    $region30: #{tpu_custom_call.1} parent=1 // pred_check
      _
    $region31: #{tpu_custom_call.1} parent=1 // pred_check_branch
      %504 = sbr.rel (0) target = $region33
    $region32: #{tpu_custom_call.1} parent=1 // pred_region
      %506 = vsyncadd [#allocation5], 0
      %s507 = sshll.u32 [#allocation8], 4
      %s508 = int_to_ptr.vmem [resolvable:$true] %s507
      %s509 = sshll.u32 %s5, 4
      %s510 = int_to_ptr.hbm [resolvable:$true] %s509
      %515 = dma.vmem_to_hbm [thread:$0]  %s508, 256, %s510, [#allocation5], 64, 64, 4
    $region33: #{tpu_custom_call.1} parent=1 // pred_fallthru
      _
    // Predicated region
    $region34: #{tpu_custom_call.1} parent=1 // pred_check
      _
    $region35: #{tpu_custom_call.1} parent=1 // pred_check_branch
      %517 = sbr.rel (0) target = $region37
    $region36: #{tpu_custom_call.1} parent=1 // pred_region
      %519 = vsyncadd [#allocation10], 0
      %s521 = sshll.u32 [#allocation9], 4
      %s522 = int_to_ptr.vmem [resolvable:$true] %s521
      %s523 = sshll.u32 %s6, 4
      %s524 = int_to_ptr.hbm [resolvable:$true] %s523
      %526 = dma.vmem_to_hbm [thread:$0]  %s522, 16, %s524, [#allocation10]
    $region37: #{tpu_custom_call.1} parent=1 // pred_fallthru
      _
    // Predicated region
    $region38: #{tpu_custom_call.1} parent=1 // pred_check
      _
    $region39: #{tpu_custom_call.1} parent=1 // pred_check_branch
      %528 = sbr.rel (0) target = $region41
    $region40: #{tpu_custom_call.1} parent=1 // pred_region
      %530 = vsyncadd [#allocation10], 0
      %s532 = sshll.u32 [#allocation11], 4
      %s533 = int_to_ptr.vmem [resolvable:$true] %s532
      %s534 = sshll.u32 %s7, 4
      %s535 = int_to_ptr.hbm [resolvable:$true] %s534
      %537 = dma.vmem_to_hbm [thread:$0]  %s533, 16, %s535, [#allocation10]
    $region41: #{tpu_custom_call.1} parent=1 // pred_fallthru
      _
    // Predicated region
    $region42: #{tpu_custom_call.1} parent=1 // pred_check
      _
    $region43: #{tpu_custom_call.1} parent=1 // pred_check_branch
      %539 = sbr.rel (0) target = $region45
    $region44: #{tpu_custom_call.1} parent=1 // pred_region
      %541 = dma.done [#allocation5], 256
    $region45: #{tpu_custom_call.1} parent=1 // pred_fallthru
      _
    // Predicated region
    $region46: #{tpu_custom_call.1} parent=1 // pred_check
      _
    $region47: #{tpu_custom_call.1} parent=1 // pred_check_branch
      %543 = sbr.rel (0) target = $region49
    $region48: #{tpu_custom_call.1} parent=1 // pred_region
      %545 = dma.done [#allocation10], 16
    $region49: #{tpu_custom_call.1} parent=1 // pred_fallthru
      _
    // Predicated region
    $region50: #{tpu_custom_call.1} parent=1 // pred_check
      _
    $region51: #{tpu_custom_call.1} parent=1 // pred_check_branch
      %547 = sbr.rel (0) target = $region53
    $region52: #{tpu_custom_call.1} parent=1 // pred_region
      %549 = dma.done [#allocation10], 16
    $region53: #{tpu_custom_call.1} parent=1 // pred_fallthru
      _
    %550 = vsyncpa [#allocation4], 1
    %551 = vsyncpa [#allocation7], 1
    %552 = vsyncpa [#allocation5], 1
    %553 = vsyncpa [#allocation10], 1

</llo_original>
